<compile_context>
chip_gen: v7x
topology: tpu7x:2x2x1
jax: 0.10.0
libtpu: 0.0.40
codegen_flags: <defaults>
</compile_context>

<pallas_src>
import jax
import jax.numpy as jnp
from jax.experimental import pallas as pl
from jax.experimental.pallas import tpu as pltpu

BERT_DIM = 768
CLIP_DIM = 512
HIDDEN_DIM = 256


def _round_up(x, m):
    return ((x + m - 1) // m) * m


def fusion_kernel(bert_h_ref,            # (1, H)  f32, resident (precomputed bert_proj)
                  s_bert_ref,            # (1, 1)  f32, resident (precomputed bert score)
                  bac_ref,               # (1, 1)  f32, resident (attention_clip bias)
                  clip_ref,              # (TB, clip_dim) bf16, streamed
                  wc_ref, bc_ref,        # clip_proj: (clip_dim, H) bf16, (1, H) f32
                  wac_ref,               # attention_clip weight as a (1, H) f32 row
                  wf_ref, bf_ref,        # fusion_proj: (H, H) bf16, (1, H) f32
                  o_ref):                # (TB, H) f32
    f32 = jnp.float32

    # clip projection: bf16 operands, f32 accumulation on the MXU.
    clip_h = jnp.dot(clip_ref[...], wc_ref[...],
                     preferred_element_type=f32) + bc_ref[...]          # (TB, H) f32

    # Attention score for clip: VPU multiply + lane reduction (no N=1 MXU matmul).
    s_clip = jnp.sum(clip_h * wac_ref[...], axis=-1, keepdims=True) + bac_ref[...]  # (TB, 1)

    # Row-wise 2-way softmax over [s_bert, s_clip]; s_bert is a hoisted constant.
    s_bert = jnp.broadcast_to(s_bert_ref[...], s_clip.shape)            # (TB, 1)
    m = jnp.maximum(s_bert, s_clip)
    e_b = jnp.exp(s_bert - m)
    e_c = jnp.exp(s_clip - m)
    inv = pl.reciprocal(e_b + e_c, approx=True)                         # EUP slot
    w_b = e_b * inv
    w_c = e_c * inv

    # Weighted fusion + final projection (output last dim = H = 256, lane dense).
    fused = w_b * bert_h_ref[...] + w_c * clip_h                        # (TB, H) f32
    o_ref[...] = (jnp.dot(fused.astype(wf_ref.dtype), wf_ref[...],
                          preferred_element_type=f32)
                  + bf_ref[...]).astype(o_ref.dtype)


def attention_fusion(bert_embedding, clip_embedding, params, *,
                     tile_b=2048, stream_dtype=jnp.bfloat16):
    """bert_embedding: (1, bert_dim) f32, clip_embedding: (B, clip_dim) f32.
    Returns (B, hidden_dim) f32."""
    assert bert_embedding.shape[0] == 1, "bert_embedding must be a single row"
    B, clip_dim = clip_embedding.shape
    hidden = params["w_fuse"].shape[1]
    prec = jax.lax.Precision.HIGHEST

    # ---- Hoisted constant bert path: runs once, outside the grid loop. ----
    bert_h = (jnp.dot(bert_embedding, params["w_bert"], precision=prec)
              + params["b_bert"])                                        # (1, H)
    s_bert = (jnp.dot(bert_h, params["w_att_bert"], precision=prec)
              + params["b_att_bert"])                                    # (1, 1)

    # ---- Batch tile selection. ----
    tb = tile_b
    # Keep >= 2 grid steps when the batch is big enough so v7x's 2 TCs both work.
    half = _round_up(pl.cdiv(B, 2), 256)
    tb = min(tb, max(half, 256))
    # Small batches: a single sublane-aligned tile (16 for bf16 packing).
    tb = min(tb, _round_up(B, 16))
    grid = (pl.cdiv(B, tb),)   # no padding / output slice: Mosaic masks partial blocks

    # ---- bf16 streaming of the bandwidth-dominant operands. ----
    clip_s = clip_embedding.astype(stream_dtype)
    w_clip = params["w_clip"].astype(stream_dtype)
    w_fuse = params["w_fuse"].astype(stream_dtype)
    w_ac_row = params["w_att_clip"].T                                    # (1, H) f32

    def resident(shape):
        # Same block index every grid step -> operand stays VMEM resident.
        return pl.BlockSpec(shape, lambda i: tuple(0 for _ in shape))

    in_specs = [
        resident((1, hidden)),                             # bert_h
        resident((1, 1)),                                  # s_bert
        resident((1, 1)),                                  # b_att_clip
        pl.BlockSpec((tb, clip_dim), lambda i: (i, 0)),    # clip tile (pipelined)
        resident(w_clip.shape), resident(params["b_clip"].shape),
        resident(w_ac_row.shape),
        resident(w_fuse.shape), resident(params["b_fuse"].shape),
    ]
    out_specs = pl.BlockSpec((tb, hidden), lambda i: (i, 0))

    return pl.pallas_call(
        fusion_kernel,
        out_shape=jax.ShapeDtypeStruct((B, hidden), jnp.float32),
        grid=grid,
        in_specs=in_specs,
        out_specs=out_specs,
        compiler_params=pltpu.CompilerParams(
            dimension_semantics=("parallel",),   # shard batch steps across TCs
            vmem_limit_bytes=48 * 1024 * 1024,   # conservative for v7x's 64 MiB VMEM
        ),
    )(bert_h, s_bert, params["b_att_clip"], clip_s,
      w_clip, params["b_clip"], w_ac_row, w_fuse, params["b_fuse"])


def init_params(key, bert_dim=BERT_DIM, clip_dim=CLIP_DIM, hidden_dim=HIDDEN_DIM):
    """PyTorch-style (uniform +/- 1/sqrt(fan_in)) init; W stored as (in, out)."""
    def linear(k, fan_in, fan_out):
        kw, kb = jax.random.split(k)
        bound = 1.0 / jnp.sqrt(jnp.float32(fan_in))
        w = jax.random.uniform(kw, (fan_in, fan_out), jnp.float32, -bound, bound)
        b = jax.random.uniform(kb, (1, fan_out), jnp.float32, -bound, bound)
        return w, b

    k1, k2, k3, k4, k5 = jax.random.split(key, 5)
    w_bert, b_bert = linear(k1, bert_dim, hidden_dim)
    w_clip, b_clip = linear(k2, clip_dim, hidden_dim)
    w_ab, b_ab = linear(k3, hidden_dim, 1)
    w_ac, b_ac = linear(k4, hidden_dim, 1)
    w_f, b_f = linear(k5, hidden_dim, hidden_dim)
    return dict(w_bert=w_bert, b_bert=b_bert,
                w_clip=w_clip, b_clip=b_clip,
                w_att_bert=w_ab, b_att_bert=b_ab,
                w_att_clip=w_ac, b_att_clip=b_ac,
                w_fuse=w_f, b_fuse=b_f)


def reference_forward(bert_emb, clip_emb, p):
    prec = jax.lax.Precision.HIGHEST
    bert_h = jnp.dot(bert_emb, p["w_bert"], precision=prec) + p["b_bert"]
    clip_h = jnp.dot(clip_emb, p["w_clip"], precision=prec) + p["b_clip"]
    bert_e = jnp.broadcast_to(bert_h, clip_h.shape)
    s_b = jnp.dot(bert_e, p["w_att_bert"], precision=prec) + p["b_att_bert"]
    s_c = jnp.dot(clip_h, p["w_att_clip"], precision=prec) + p["b_att_clip"]
    w = jax.nn.softmax(jnp.concatenate([s_b, s_c], axis=1), axis=1)
    fused = w[:, 0:1] * bert_e + w[:, 1:2] * clip_h
    return jnp.dot(fused, p["w_fuse"], precision=prec) + p["b_fuse"]


if __name__ == "__main__":
    key = jax.random.PRNGKey(0)
    kp, kb, kc = jax.random.split(key, 3)

    params = init_params(kp)
    bert_embedding = jax.random.normal(kb, (1, BERT_DIM), dtype=jnp.float32)
    clip_batch = 16
    clip_embedding = jax.random.normal(kc, (clip_batch, CLIP_DIM), dtype=jnp.float32)

    out = attention_fusion(bert_embedding, clip_embedding, params)
    out = jax.block_until_ready(out)

    ref = reference_forward(bert_embedding, clip_embedding, params)
    assert out.shape == (clip_batch, HIDDEN_DIM)
    # Tolerance covers bf16 streaming of the clip tile / MXU-default rounding of the
    # two big matmuls vs the full-f32 HIGHEST-precision reference (512/256-length
    # reductions); the hoisted bert path is bit-matched (computed at HIGHEST).
    max_err = float(jnp.max(jnp.abs(out - ref)))
    assert jnp.allclose(out, ref, atol=2e-2, rtol=2e-2), max_err

    print("KERNEL_OK")
</pallas_src>

<mosaic_0001>
module attributes {stable_mosaic.version = 11 : i64} {
  func.func @fusion_kernel(%arg0: i32, %arg1: memref<1x256xf32, #tpu.memory_space<vmem>>, %arg2: memref<1x1xf32, #tpu.memory_space<vmem>>, %arg3: memref<1x1xf32, #tpu.memory_space<vmem>>, %arg4: memref<16x512xbf16, #tpu.memory_space<vmem>>, %arg5: memref<512x256xbf16, #tpu.memory_space<vmem>>, %arg6: memref<1x256xf32, #tpu.memory_space<vmem>>, %arg7: memref<1x256xf32, #tpu.memory_space<vmem>>, %arg8: memref<256x256xbf16, #tpu.memory_space<vmem>>, %arg9: memref<1x256xf32, #tpu.memory_space<vmem>>, %arg10: memref<16x256xf32, #tpu.memory_space<vmem>>) attributes {dimension_semantics = [#tpu.dimension_semantics<parallel>], iteration_bounds = array<i64: 1>, scalar_prefetch = 0 : i64, scratch_operands = 0 : i64, tpu.core_type = #tpu.core_type<tc>, window_params = [{pipeline_mode = #tpu.pipeline_mode<synchronous>, transform_indices = @transform_0, window_bounds = array<i64: 1, 256>}, {pipeline_mode = #tpu.pipeline_mode<synchronous>, transform_indices = @transform_1, window_bounds = array<i64: 1, 1>}, {pipeline_mode = #tpu.pipeline_mode<synchronous>, transform_indices = @transform_2, window_bounds = array<i64: 1, 1>}, {transform_indices = @transform_3, window_bounds = array<i64: 16, 512>}, {pipeline_mode = #tpu.pipeline_mode<synchronous>, transform_indices = @transform_4, window_bounds = array<i64: 512, 256>}, {pipeline_mode = #tpu.pipeline_mode<synchronous>, transform_indices = @transform_5, window_bounds = array<i64: 1, 256>}, {pipeline_mode = #tpu.pipeline_mode<synchronous>, transform_indices = @transform_6, window_bounds = array<i64: 1, 256>}, {pipeline_mode = #tpu.pipeline_mode<synchronous>, transform_indices = @transform_7, window_bounds = array<i64: 256, 256>}, {pipeline_mode = #tpu.pipeline_mode<synchronous>, transform_indices = @transform_8, window_bounds = array<i64: 1, 256>}, {transform_indices = @transform_9, window_bounds = array<i64: 16, 256>}]} {
    %c0 = arith.constant 0 : index
    %c0_0 = arith.constant 0 : index
    %0 = vector.load %arg4[%c0, %c0_0] : memref<16x512xbf16, #tpu.memory_space<vmem>>, vector<16x512xbf16>
    %c0_1 = arith.constant 0 : index
    %c0_2 = arith.constant 0 : index
    %1 = vector.load %arg5[%c0_1, %c0_2] : memref<512x256xbf16, #tpu.memory_space<vmem>>, vector<512x256xbf16>
    %cst = arith.constant dense<0.000000e+00> : vector<16x256xf32>
    %2 = tpu.matmul %0, %1, %cst {dimension_numbers = #tpu.dot_dimension_numbers<[1], [0], [0], [1], [0, 0, 1, 1], [], []>} : vector<16x512xbf16>, vector<512x256xbf16>, vector<16x256xf32> -> vector<16x256xf32>
    %c0_3 = arith.constant 0 : index
    %c0_4 = arith.constant 0 : index
    %3 = vector.load %arg6[%c0_3, %c0_4] : memref<1x256xf32, #tpu.memory_space<vmem>>, vector<1x256xf32>
    %4 = vector.broadcast %3 : vector<1x256xf32> to vector<16x256xf32>
    %5 = arith.addf %2, %4 : vector<16x256xf32>
    %c0_5 = arith.constant 0 : index
    %c0_6 = arith.constant 0 : index
    %6 = vector.load %arg7[%c0_5, %c0_6] : memref<1x256xf32, #tpu.memory_space<vmem>>, vector<1x256xf32>
    %7 = vector.broadcast %6 : vector<1x256xf32> to vector<16x256xf32>
    %8 = arith.mulf %5, %7 : vector<16x256xf32>
    %cst_7 = arith.constant dense<0.000000e+00> : vector<16xf32>
    %9 = vector.multi_reduction <add>, %8, %cst_7 [1] : vector<16x256xf32> to vector<16xf32>
    %10 = vector.shape_cast %9 : vector<16xf32> to vector<16x1xf32>
    %c0_8 = arith.constant 0 : index
    %c0_9 = arith.constant 0 : index
    %11 = vector.load %arg3[%c0_8, %c0_9] : memref<1x1xf32, #tpu.memory_space<vmem>>, vector<1x1xf32>
    %12 = vector.broadcast %11 : vector<1x1xf32> to vector<16x1xf32>
    %13 = arith.addf %10, %12 : vector<16x1xf32>
    %c0_10 = arith.constant 0 : index
    %c0_11 = arith.constant 0 : index
    %14 = vector.load %arg2[%c0_10, %c0_11] : memref<1x1xf32, #tpu.memory_space<vmem>>, vector<1x1xf32>
    %15 = vector.shape_cast %14 : vector<1x1xf32> to vector<1x1xf32>
    %16 = vector.broadcast %15 : vector<1x1xf32> to vector<16x1xf32>
    %17 = arith.maximumf %16, %13 : vector<16x1xf32>
    %18 = arith.subf %16, %17 : vector<16x1xf32>
    %19 = math.exp %18 : vector<16x1xf32>
    %20 = arith.subf %13, %17 : vector<16x1xf32>
    %21 = math.exp %20 : vector<16x1xf32>
    %22 = arith.addf %19, %21 : vector<16x1xf32>
    %23 = tpu.reciprocal %22 {approx = true} : vector<16x1xf32> -> vector<16x1xf32>
    %24 = arith.mulf %19, %23 : vector<16x1xf32>
    %25 = arith.mulf %21, %23 : vector<16x1xf32>
    %c0_12 = arith.constant 0 : index
    %c0_13 = arith.constant 0 : index
    %26 = vector.load %arg1[%c0_12, %c0_13] : memref<1x256xf32, #tpu.memory_space<vmem>>, vector<1x256xf32>
    %27 = vector.broadcast %24 : vector<16x1xf32> to vector<16x256xf32>
    %28 = vector.broadcast %26 : vector<1x256xf32> to vector<16x256xf32>
    %29 = arith.mulf %27, %28 : vector<16x256xf32>
    %30 = vector.broadcast %25 : vector<16x1xf32> to vector<16x256xf32>
    %31 = arith.mulf %30, %5 : vector<16x256xf32>
    %32 = arith.addf %29, %31 : vector<16x256xf32>
    %33 = arith.truncf %32 : vector<16x256xf32> to vector<16x256xbf16>
    %c0_14 = arith.constant 0 : index
    %c0_15 = arith.constant 0 : index
    %34 = vector.load %arg8[%c0_14, %c0_15] : memref<256x256xbf16, #tpu.memory_space<vmem>>, vector<256x256xbf16>
    %cst_16 = arith.constant dense<0.000000e+00> : vector<16x256xf32>
    %35 = tpu.matmul %33, %34, %cst_16 {dimension_numbers = #tpu.dot_dimension_numbers<[1], [0], [0], [1], [0, 0, 1, 1], [], []>} : vector<16x256xbf16>, vector<256x256xbf16>, vector<16x256xf32> -> vector<16x256xf32>
    %c0_17 = arith.constant 0 : index
    %c0_18 = arith.constant 0 : index
    %36 = vector.load %arg9[%c0_17, %c0_18] : memref<1x256xf32, #tpu.memory_space<vmem>>, vector<1x256xf32>
    %37 = vector.broadcast %36 : vector<1x256xf32> to vector<16x256xf32>
    %38 = arith.addf %35, %37 : vector<16x256xf32>
    %c0_19 = arith.constant 0 : index
    %c0_20 = arith.constant 0 : index
    %39 = vector.load %arg10[%c0_19, %c0_20] : memref<16x256xf32, #tpu.memory_space<vmem>>, vector<16x256xf32>
    tpu.vector_store %arg10[%c0_19, %c0_20], %38 {strides = array<i32>} : memref<16x256xf32, #tpu.memory_space<vmem>>, vector<16x256xf32>,
    return
  }
  func.func @transform_0(%arg0: i32) -> (i32, i32) {
    %c0_i32 = arith.constant 0 : i32
    %c0_i32_0 = arith.constant 0 : i32
    %c0_i32_1 = arith.constant 0 : i32
    return %c0_i32, %c0_i32_0 : i32, i32
  }
  func.func @transform_1(%arg0: i32) -> (i32, i32) {
    %c0_i32 = arith.constant 0 : i32
    %c0_i32_0 = arith.constant 0 : i32
    %c0_i32_1 = arith.constant 0 : i32
    return %c0_i32, %c0_i32_0 : i32, i32
  }
  func.func @transform_2(%arg0: i32) -> (i32, i32) {
    %c0_i32 = arith.constant 0 : i32
    %c0_i32_0 = arith.constant 0 : i32
    %c0_i32_1 = arith.constant 0 : i32
    return %c0_i32, %c0_i32_0 : i32, i32
  }
  func.func @transform_3(%arg0: i32) -> (i32, i32) {
    %c0_i32 = arith.constant 0 : i32
    %c0_i32_0 = arith.constant 0 : i32
    return %arg0, %c0_i32 : i32, i32
  }
  func.func @transform_4(%arg0: i32) -> (i32, i32) {
    %c0_i32 = arith.constant 0 : i32
    %c0_i32_0 = arith.constant 0 : i32
    %c0_i32_1 = arith.constant 0 : i32
    return %c0_i32, %c0_i32_0 : i32, i32
  }
  func.func @transform_5(%arg0: i32) -> (i32, i32) {
    %c0_i32 = arith.constant 0 : i32
    %c0_i32_0 = arith.constant 0 : i32
    %c0_i32_1 = arith.constant 0 : i32
    return %c0_i32, %c0_i32_0 : i32, i32
  }
  func.func @transform_6(%arg0: i32) -> (i32, i32) {
    %c0_i32 = arith.constant 0 : i32
    %c0_i32_0 = arith.constant 0 : i32
    %c0_i32_1 = arith.constant 0 : i32
    return %c0_i32, %c0_i32_0 : i32, i32
  }
  func.func @transform_7(%arg0: i32) -> (i32, i32) {
    %c0_i32 = arith.constant 0 : i32
    %c0_i32_0 = arith.constant 0 : i32
    %c0_i32_1 = arith.constant 0 : i32
    return %c0_i32, %c0_i32_0 : i32, i32
  }
  func.func @transform_8(%arg0: i32) -> (i32, i32) {
    %c0_i32 = arith.constant 0 : i32
    %c0_i32_0 = arith.constant 0 : i32
    %c0_i32_1 = arith.constant 0 : i32
    return %c0_i32, %c0_i32_0 : i32, i32
  }
  func.func @transform_9(%arg0: i32) -> (i32, i32) {
    %c0_i32 = arith.constant 0 : i32
    %c0_i32_0 = arith.constant 0 : i32
    return %arg0, %c0_i32 : i32, i32
  }
}

</mosaic_0001>

<llo_original>
// kernel: tpu_custom_call.1
$region0: #{tpu_custom_call.1}
  #allocation0 [shape = 'u32[]', space=smem, size = 0x4, offset = 0x4, fixed_abs, tag = 'smem constant byte address 0x4 - core index']
  #allocation1 [shape = 'u32[144,128]{1,0:T(1,128)}', space=vmem, size = 0x12000, scoped, tag = 'internal scratch']
  #allocation2 [shape = 'f32[1,1]{1,0:T(1,128)S(1)}', space=vmem, size = 0x200, scoped, tag = 'scoped memory for tpu_custom_call.1']
  #allocation3 [shape = 'f32[1,1]{1,0:T(1,128)S(1)}', space=vmem, size = 0x200, scoped, tag = 'scoped memory for tpu_custom_call.1']
  %s0 = inlined_call_operand.vmem [shape: f32[1,256], index: 0, kind: input, shape index: {}]
  %s1 = inlined_call_operand.<no memory space> [shape: f32[1,1], index: 1, kind: input, shape index: {}]
  %s2 = inlined_call_operand.<no memory space> [shape: f32[1,1], index: 2, kind: input, shape index: {}]
  %s3 = inlined_call_operand.hbm [shape: bf16[16,512], index: 3, kind: input, shape index: {}]
  %s4 = inlined_call_operand.hbm [shape: bf16[512,256], index: 4, kind: input, shape index: {}]
  %s5 = inlined_call_operand.vmem [shape: f32[1,256], index: 5, kind: input, shape index: {}]
  %s6 = inlined_call_operand.vmem [shape: f32[1,256], index: 6, kind: input, shape index: {}]
  %s7 = inlined_call_operand.hbm [shape: bf16[256,256], index: 7, kind: input, shape index: {}]
  %s8 = inlined_call_operand.vmem [shape: f32[1,256], index: 8, kind: input, shape index: {}]
  %s9 = inlined_call_operand.hbm [shape: f32[16,256], index: 9, kind: output, shape index: {}]
  %s10 = sld [smem:[#allocation0]]
  $region58: #{tpu_custom_call.1} parent=0
    _
  %s12 = ssub.s32 1, %s10
  %s13 = scalar_select 0, %s12, %s10
  %v14 = vstv %s1
  %15 = vst [vmem:[#allocation2] sm:$0x1] %v14
  %v16 = vstv %s2
  %17 = vst [vmem:[#allocation3] sm:$0x1] %v16
  $region1: #{tpu_custom_call.1} parent=0
    #allocation4 [shape = 'u8[16384]{0}', space=vmem, size = 0x4000, scoped, tag = 'input window, operand 3, single buffered']
    #allocation5 [shape = 's32[1]{0}', space=sflag, size = 0x4, scoped, tag = 'scoped memory for tpu_custom_call.1']
    #allocation6 [shape = 's32[1]{0}', space=sflag, size = 0x4, scoped, tag = 'scoped memory for tpu_custom_call.1']
    #allocation7 [shape = 'u8[262144]{0}', space=vmem, size = 0x40000, scoped, tag = 'input window, operand 4, single buffered']
    #allocation8 [shape = 's32[1]{0}', space=sflag, size = 0x4, scoped, tag = 'scoped memory for tpu_custom_call.1']
    #allocation9 [shape = 'u8[131072]{0}', space=vmem, size = 0x20000, scoped, tag = 'input window, operand 7, single buffered']
    #allocation10 [shape = 'u8[16384]{0}', space=vmem, size = 0x4000, scoped, tag = 'output window, operand 0, single buffered']
    %18 = vsyncpa [#allocation5], 0
    %19 = vsyncpa [#allocation8], 0
    %20 = vsyncpa [#allocation6], 0
    // Predicated region
    $region2: #{tpu_custom_call.1} parent=1 // pred_check
      _
    $region3: #{tpu_custom_call.1} parent=1 // pred_check_branch
      %22 = sbr.rel (0) target = $region5
    $region4: #{tpu_custom_call.1} parent=1 // pred_region
      _
    $region5: #{tpu_custom_call.1} parent=1 // pred_fallthru
      _
    // Predicated region
    $region6: #{tpu_custom_call.1} parent=1 // pred_check
      _
    $region7: #{tpu_custom_call.1} parent=1 // pred_check_branch
      %24 = sbr.rel (0) target = $region9
    $region8: #{tpu_custom_call.1} parent=1 // pred_region
      _
    $region9: #{tpu_custom_call.1} parent=1 // pred_fallthru
      _
    // Predicated region
    $region10: #{tpu_custom_call.1} parent=1 // pred_check
      _
    $region11: #{tpu_custom_call.1} parent=1 // pred_check_branch
      %26 = sbr.rel (0) target = $region13
    $region12: #{tpu_custom_call.1} parent=1 // pred_region
      _
    $region13: #{tpu_custom_call.1} parent=1 // pred_fallthru
      _
    // Predicated region
    $region14: #{tpu_custom_call.1} parent=1 // pred_check
      _
    $region15: #{tpu_custom_call.1} parent=1 // pred_check_branch
      %28 = sbr.rel (0) target = $region17
    $region16: #{tpu_custom_call.1} parent=1 // pred_region
      %s30 = ssub.s32 512, 512
      %31 = vsyncadd [#allocation5], %s30
      %s32 = sshll.u32 [#allocation4], 4
      %s33 = int_to_ptr.vmem [resolvable:$true] %s32
      %38 = dma.hbm_to_vmem [thread:$0]  %s3, 512, %s33, [#allocation5], 256, 256, 16
    $region17: #{tpu_custom_call.1} parent=1 // pred_fallthru
      _
    // Predicated region
    $region18: #{tpu_custom_call.1} parent=1 // pred_check
      _
    $region19: #{tpu_custom_call.1} parent=1 // pred_check_branch
      %40 = sbr.rel (0) target = $region21
    $region20: #{tpu_custom_call.1} parent=1 // pred_region
      %s42 = ssub.s32 8192, 8192
      %43 = vsyncadd [#allocation8], %s42
      %s44 = sshll.u32 [#allocation7], 4
      %s45 = int_to_ptr.vmem [resolvable:$true] %s44
      %50 = dma.hbm_to_vmem [thread:$0]  %s4, 8192, %s45, [#allocation8], 128, 128, 8
    $region21: #{tpu_custom_call.1} parent=1 // pred_fallthru
      _
    // Predicated region
    $region22: #{tpu_custom_call.1} parent=1 // pred_check
      _
    $region23: #{tpu_custom_call.1} parent=1 // pred_check_branch
      %52 = sbr.rel (0) target = $region25
    $region24: #{tpu_custom_call.1} parent=1 // pred_region
      _
    $region25: #{tpu_custom_call.1} parent=1 // pred_fallthru
      _
    // Predicated region
    $region26: #{tpu_custom_call.1} parent=1 // pred_check
      _
    $region27: #{tpu_custom_call.1} parent=1 // pred_check_branch
      %54 = sbr.rel (0) target = $region29
    $region28: #{tpu_custom_call.1} parent=1 // pred_region
      _
    $region29: #{tpu_custom_call.1} parent=1 // pred_fallthru
      _
    // Predicated region
    $region30: #{tpu_custom_call.1} parent=1 // pred_check
      _
    $region31: #{tpu_custom_call.1} parent=1 // pred_check_branch
      %56 = sbr.rel (0) target = $region33
    $region32: #{tpu_custom_call.1} parent=1 // pred_region
      %s58 = ssub.s32 4096, 4096
      %59 = vsyncadd [#allocation8], %s58
      %s60 = sshll.u32 [#allocation9], 4
      %s61 = int_to_ptr.vmem [resolvable:$true] %s60
      %66 = dma.hbm_to_vmem [thread:$0]  %s7, 4096, %s61, [#allocation8], 128, 128, 8
    $region33: #{tpu_custom_call.1} parent=1 // pred_fallthru
      _
    // Predicated region
    $region34: #{tpu_custom_call.1} parent=1 // pred_check
      _
    $region35: #{tpu_custom_call.1} parent=1 // pred_check_branch
      %68 = sbr.rel (0) target = $region37
    $region36: #{tpu_custom_call.1} parent=1 // pred_region
      _
    $region37: #{tpu_custom_call.1} parent=1 // pred_fallthru
      _
    // Predicated region
    $region38: #{tpu_custom_call.1} parent=1 // pred_check
      _
    $region39: #{tpu_custom_call.1} parent=1 // pred_check_branch
      %70 = sbr.rel (0) target = $region41
    $region40: #{tpu_custom_call.1} parent=1 // pred_region
      %71 = dma.done [#allocation5], 512
    $region41: #{tpu_custom_call.1} parent=1 // pred_fallthru
      _
    // Predicated region
    $region42: #{tpu_custom_call.1} parent=1 // pred_check
      _
    $region43: #{tpu_custom_call.1} parent=1 // pred_check_branch
      %73 = sbr.rel (0) target = $region45
    $region44: #{tpu_custom_call.1} parent=1 // pred_region
      %74 = dma.done [#allocation8], 8192
    $region45: #{tpu_custom_call.1} parent=1 // pred_fallthru
      _
    // Predicated region
    $region46: #{tpu_custom_call.1} parent=1 // pred_check
      _
    $region47: #{tpu_custom_call.1} parent=1 // pred_check_branch
      %76 = sbr.rel (0) target = $region49
    $region48: #{tpu_custom_call.1} parent=1 // pred_region
      %77 = dma.done [#allocation8], 4096
    $region49: #{tpu_custom_call.1} parent=1 // pred_fallthru
      _
    %v78 = vld [vmem:[#allocation4] sm:$0xff]
    %v79 = vld [vmem:[#allocation4 + $0x8] sm:$0xff]
    %v80 = vld [vmem:[#allocation4 + $0x10] sm:$0xff]
    %v81 = vld [vmem:[#allocation4 + $0x18] sm:$0xff]
    %v82 = vld [vmem:[#allocation7] sm:$0xff]
    %v83 = vld [vmem:[#allocation7 + $0x8] sm:$0xff]
    %v84 = vld [vmem:[#allocation7 + $0x10] sm:$0xff]
    %v85 = vld [vmem:[#allocation7 + $0x18] sm:$0xff]
    %v86 = vld [vmem:[#allocation7 + $0x20] sm:$0xff]
    %v87 = vld [vmem:[#allocation7 + $0x28] sm:$0xff]
    %v88 = vld [vmem:[#allocation7 + $0x30] sm:$0xff]
    %v89 = vld [vmem:[#allocation7 + $0x38] sm:$0xff]
    %v90 = vld [vmem:[#allocation7 + $0x40] sm:$0xff]
    %v91 = vld [vmem:[#allocation7 + $0x48] sm:$0xff]
    %v92 = vld [vmem:[#allocation7 + $0x50] sm:$0xff]
    %v93 = vld [vmem:[#allocation7 + $0x58] sm:$0xff]
    %v94 = vld [vmem:[#allocation7 + $0x60] sm:$0xff]
    %v95 = vld [vmem:[#allocation7 + $0x68] sm:$0xff]
    %v96 = vld [vmem:[#allocation7 + $0x70] sm:$0xff]
    %v97 = vld [vmem:[#allocation7 + $0x78] sm:$0xff]
    %v98 = vld [vmem:[#allocation7 + $0x80] sm:$0xff]
    %v99 = vld [vmem:[#allocation7 + $0x88] sm:$0xff]
    %v100 = vld [vmem:[#allocation7 + $0x90] sm:$0xff]
    %v101 = vld [vmem:[#allocation7 + $0x98] sm:$0xff]
    %v102 = vld [vmem:[#allocation7 + $0xa0] sm:$0xff]
    %v103 = vld [vmem:[#allocation7 + $0xa8] sm:$0xff]
    %v104 = vld [vmem:[#allocation7 + $0xb0] sm:$0xff]
    %v105 = vld [vmem:[#allocation7 + $0xb8] sm:$0xff]
    %v106 = vld [vmem:[#allocation7 + $0xc0] sm:$0xff]
    %v107 = vld [vmem:[#allocation7 + $0xc8] sm:$0xff]
    %v108 = vld [vmem:[#allocation7 + $0xd0] sm:$0xff]
    %v109 = vld [vmem:[#allocation7 + $0xd8] sm:$0xff]
    %v110 = vld [vmem:[#allocation7 + $0xe0] sm:$0xff]
    %v111 = vld [vmem:[#allocation7 + $0xe8] sm:$0xff]
    %v112 = vld [vmem:[#allocation7 + $0xf0] sm:$0xff]
    %v113 = vld [vmem:[#allocation7 + $0xf8] sm:$0xff]
    %v114 = vld [vmem:[#allocation7 + $0x100] sm:$0xff]
    %v115 = vld [vmem:[#allocation7 + $0x108] sm:$0xff]
    %v116 = vld [vmem:[#allocation7 + $0x110] sm:$0xff]
    %v117 = vld [vmem:[#allocation7 + $0x118] sm:$0xff]
    %v118 = vld [vmem:[#allocation7 + $0x120] sm:$0xff]
    %v119 = vld [vmem:[#allocation7 + $0x128] sm:$0xff]
    %v120 = vld [vmem:[#allocation7 + $0x130] sm:$0xff]
    %v121 = vld [vmem:[#allocation7 + $0x138] sm:$0xff]
    %v122 = vld [vmem:[#allocation7 + $0x140] sm:$0xff]
    %v123 = vld [vmem:[#allocation7 + $0x148] sm:$0xff]
    %v124 = vld [vmem:[#allocation7 + $0x150] sm:$0xff]
    %v125 = vld [vmem:[#allocation7 + $0x158] sm:$0xff]
    %v126 = vld [vmem:[#allocation7 + $0x160] sm:$0xff]
    %v127 = vld [vmem:[#allocation7 + $0x168] sm:$0xff]
    %v128 = vld [vmem:[#allocation7 + $0x170] sm:$0xff]
    %v129 = vld [vmem:[#allocation7 + $0x178] sm:$0xff]
    %v130 = vld [vmem:[#allocation7 + $0x180] sm:$0xff]
    %v131 = vld [vmem:[#allocation7 + $0x188] sm:$0xff]
    %v132 = vld [vmem:[#allocation7 + $0x190] sm:$0xff]
    %v133 = vld [vmem:[#allocation7 + $0x198] sm:$0xff]
    %v134 = vld [vmem:[#allocation7 + $0x1a0] sm:$0xff]
    %v135 = vld [vmem:[#allocation7 + $0x1a8] sm:$0xff]
    %v136 = vld [vmem:[#allocation7 + $0x1b0] sm:$0xff]
    %v137 = vld [vmem:[#allocation7 + $0x1b8] sm:$0xff]
    %v138 = vld [vmem:[#allocation7 + $0x1c0] sm:$0xff]
    %v139 = vld [vmem:[#allocation7 + $0x1c8] sm:$0xff]
    %v140 = vld [vmem:[#allocation7 + $0x1d0] sm:$0xff]
    %v141 = vld [vmem:[#allocation7 + $0x1d8] sm:$0xff]
    %v142 = vld [vmem:[#allocation7 + $0x1e0] sm:$0xff]
    %v143 = vld [vmem:[#allocation7 + $0x1e8] sm:$0xff]
    %v144 = vld [vmem:[#allocation7 + $0x1f0] sm:$0xff]
    %v145 = vld [vmem:[#allocation7 + $0x1f8] sm:$0xff]
    %v146 = vld [vmem:[%s5] sm:$0x3]
    %v148 = vlaneseq
    %v149 = vshrl.u32 %v148, 7
    %v150 = vsub.s32 0, %v149
    %v151 = vrot.slane %v146, %v150
    %v152 = vlaneseq
    %v153 = vshrl.u32 %v152, 7
    %v154 = vsub.s32 1, %v153
    %v155 = vrot.slane %v146, %v154
    %v162 = vunpack.c.l.b16 %v78
    %v163 = vunpack.c.h.b16 %v78
    %v164 = vunpack.c.l.b16 %v79
    %v165 = vunpack.c.h.b16 %v79
    %v166 = vunpack.c.l.b16 %v80
    %v167 = vunpack.c.h.b16 %v80
    %v168 = vunpack.c.l.b16 %v81
    %v169 = vunpack.c.h.b16 %v81
    %v170 = vpack.c.b16 %v166, %v162
    %v171 = vpack.c.b16 %v167, %v163
    %v172 = vpack.c.b16 %v168, %v164
    %v173 = vpack.c.b16 %v169, %v165
    %v242 = vunpack.c.l.b16 %v82
    %v243 = vunpack.c.h.b16 %v82
    %v244 = vunpack.c.l.b16 %v83
    %v245 = vunpack.c.h.b16 %v83
    %v246 = vunpack.c.l.b16 %v84
    %v247 = vunpack.c.h.b16 %v84
    %v248 = vunpack.c.l.b16 %v85
    %v249 = vunpack.c.h.b16 %v85
    %v250 = vunpack.c.l.b16 %v86
    %v251 = vunpack.c.h.b16 %v86
    %v252 = vunpack.c.l.b16 %v87
    %v253 = vunpack.c.h.b16 %v87
    %v254 = vunpack.c.l.b16 %v88
    %v255 = vunpack.c.h.b16 %v88
    %v256 = vunpack.c.l.b16 %v89
    %v257 = vunpack.c.h.b16 %v89
    %v258 = vunpack.c.l.b16 %v90
    %v259 = vunpack.c.h.b16 %v90
    %v260 = vunpack.c.l.b16 %v91
    %v261 = vunpack.c.h.b16 %v91
    %v262 = vunpack.c.l.b16 %v92
    %v263 = vunpack.c.h.b16 %v92
    %v264 = vunpack.c.l.b16 %v93
    %v265 = vunpack.c.h.b16 %v93
    %v266 = vunpack.c.l.b16 %v94
    %v267 = vunpack.c.h.b16 %v94
    %v268 = vunpack.c.l.b16 %v95
    %v269 = vunpack.c.h.b16 %v95
    %v270 = vunpack.c.l.b16 %v96
    %v271 = vunpack.c.h.b16 %v96
    %v272 = vunpack.c.l.b16 %v97
    %v273 = vunpack.c.h.b16 %v97
    %v274 = vunpack.c.l.b16 %v98
    %v275 = vunpack.c.h.b16 %v98
    %v276 = vunpack.c.l.b16 %v99
    %v277 = vunpack.c.h.b16 %v99
    %v278 = vunpack.c.l.b16 %v100
    %v279 = vunpack.c.h.b16 %v100
    %v280 = vunpack.c.l.b16 %v101
    %v281 = vunpack.c.h.b16 %v101
    %v282 = vunpack.c.l.b16 %v102
    %v283 = vunpack.c.h.b16 %v102
    %v284 = vunpack.c.l.b16 %v103
    %v285 = vunpack.c.h.b16 %v103
    %v286 = vunpack.c.l.b16 %v104
    %v287 = vunpack.c.h.b16 %v104
    %v288 = vunpack.c.l.b16 %v105
    %v289 = vunpack.c.h.b16 %v105
    %v290 = vunpack.c.l.b16 %v106
    %v291 = vunpack.c.h.b16 %v106
    %v292 = vunpack.c.l.b16 %v107
    %v293 = vunpack.c.h.b16 %v107
    %v294 = vunpack.c.l.b16 %v108
    %v295 = vunpack.c.h.b16 %v108
    %v296 = vunpack.c.l.b16 %v109
    %v297 = vunpack.c.h.b16 %v109
    %v298 = vunpack.c.l.b16 %v110
    %v299 = vunpack.c.h.b16 %v110
    %v300 = vunpack.c.l.b16 %v111
    %v301 = vunpack.c.h.b16 %v111
    %v302 = vunpack.c.l.b16 %v112
    %v303 = vunpack.c.h.b16 %v112
    %v304 = vunpack.c.l.b16 %v113
    %v305 = vunpack.c.h.b16 %v113
    %v306 = vunpack.c.l.b16 %v114
    %v307 = vunpack.c.h.b16 %v114
    %v308 = vunpack.c.l.b16 %v115
    %v309 = vunpack.c.h.b16 %v115
    %v310 = vunpack.c.l.b16 %v116
    %v311 = vunpack.c.h.b16 %v116
    %v312 = vunpack.c.l.b16 %v117
    %v313 = vunpack.c.h.b16 %v117
    %v314 = vunpack.c.l.b16 %v118
    %v315 = vunpack.c.h.b16 %v118
    %v316 = vunpack.c.l.b16 %v119
    %v317 = vunpack.c.h.b16 %v119
    %v318 = vunpack.c.l.b16 %v120
    %v319 = vunpack.c.h.b16 %v120
    %v320 = vunpack.c.l.b16 %v121
    %v321 = vunpack.c.h.b16 %v121
    %v322 = vunpack.c.l.b16 %v122
    %v323 = vunpack.c.h.b16 %v122
    %v324 = vunpack.c.l.b16 %v123
    %v325 = vunpack.c.h.b16 %v123
    %v326 = vunpack.c.l.b16 %v124
    %v327 = vunpack.c.h.b16 %v124
    %v328 = vunpack.c.l.b16 %v125
    %v329 = vunpack.c.h.b16 %v125
    %v330 = vunpack.c.l.b16 %v126
    %v331 = vunpack.c.h.b16 %v126
    %v332 = vunpack.c.l.b16 %v127
    %v333 = vunpack.c.h.b16 %v127
    %v334 = vunpack.c.l.b16 %v128
    %v335 = vunpack.c.h.b16 %v128
    %v336 = vunpack.c.l.b16 %v129
    %v337 = vunpack.c.h.b16 %v129
    %v338 = vunpack.c.l.b16 %v130
    %v339 = vunpack.c.h.b16 %v130
    %v340 = vunpack.c.l.b16 %v131
    %v341 = vunpack.c.h.b16 %v131
    %v342 = vunpack.c.l.b16 %v132
    %v343 = vunpack.c.h.b16 %v132
    %v344 = vunpack.c.l.b16 %v133
    %v345 = vunpack.c.h.b16 %v133
    %v346 = vunpack.c.l.b16 %v134
    %v347 = vunpack.c.h.b16 %v134
    %v348 = vunpack.c.l.b16 %v135
    %v349 = vunpack.c.h.b16 %v135
    %v350 = vunpack.c.l.b16 %v136
    %v351 = vunpack.c.h.b16 %v136
    %v352 = vunpack.c.l.b16 %v137
    %v353 = vunpack.c.h.b16 %v137
    %v354 = vunpack.c.l.b16 %v138
    %v355 = vunpack.c.h.b16 %v138
    %v356 = vunpack.c.l.b16 %v139
    %v357 = vunpack.c.h.b16 %v139
    %v358 = vunpack.c.l.b16 %v140
    %v359 = vunpack.c.h.b16 %v140
    %v360 = vunpack.c.l.b16 %v141
    %v361 = vunpack.c.h.b16 %v141
    %v362 = vunpack.c.l.b16 %v142
    %v363 = vunpack.c.h.b16 %v142
    %v364 = vunpack.c.l.b16 %v143
    %v365 = vunpack.c.h.b16 %v143
    %v366 = vunpack.c.l.b16 %v144
    %v367 = vunpack.c.h.b16 %v144
    %v368 = vunpack.c.l.b16 %v145
    %v369 = vunpack.c.h.b16 %v145
    %v370 = vpack.c.b16 %v244, %v242
    %v371 = vpack.c.b16 %v245, %v243
    %v372 = vpack.c.b16 %v248, %v246
    %v373 = vpack.c.b16 %v249, %v247
    %v374 = vpack.c.b16 %v252, %v250
    %v375 = vpack.c.b16 %v253, %v251
    %v376 = vpack.c.b16 %v256, %v254
    %v377 = vpack.c.b16 %v257, %v255
    %v378 = vpack.c.b16 %v260, %v258
    %v379 = vpack.c.b16 %v261, %v259
    %v380 = vpack.c.b16 %v264, %v262
    %v381 = vpack.c.b16 %v265, %v263
    %v382 = vpack.c.b16 %v268, %v266
    %v383 = vpack.c.b16 %v269, %v267
    %v384 = vpack.c.b16 %v272, %v270
    %v385 = vpack.c.b16 %v273, %v271
    %v386 = vpack.c.b16 %v276, %v274
    %v387 = vpack.c.b16 %v277, %v275
    %v388 = vpack.c.b16 %v280, %v278
    %v389 = vpack.c.b16 %v281, %v279
    %v390 = vpack.c.b16 %v284, %v282
    %v391 = vpack.c.b16 %v285, %v283
    %v392 = vpack.c.b16 %v288, %v286
    %v393 = vpack.c.b16 %v289, %v287
    %v394 = vpack.c.b16 %v292, %v290
    %v395 = vpack.c.b16 %v293, %v291
    %v396 = vpack.c.b16 %v296, %v294
    %v397 = vpack.c.b16 %v297, %v295
    %v398 = vpack.c.b16 %v300, %v298
    %v399 = vpack.c.b16 %v301, %v299
    %v400 = vpack.c.b16 %v304, %v302
    %v401 = vpack.c.b16 %v305, %v303
    %v402 = vpack.c.b16 %v308, %v306
    %v403 = vpack.c.b16 %v309, %v307
    %v404 = vpack.c.b16 %v312, %v310
    %v405 = vpack.c.b16 %v313, %v311
    %v406 = vpack.c.b16 %v316, %v314
    %v407 = vpack.c.b16 %v317, %v315
    %v408 = vpack.c.b16 %v320, %v318
    %v409 = vpack.c.b16 %v321, %v319
    %v410 = vpack.c.b16 %v324, %v322
    %v411 = vpack.c.b16 %v325, %v323
    %v412 = vpack.c.b16 %v328, %v326
    %v413 = vpack.c.b16 %v329, %v327
    %v414 = vpack.c.b16 %v332, %v330
    %v415 = vpack.c.b16 %v333, %v331
    %v416 = vpack.c.b16 %v336, %v334
    %v417 = vpack.c.b16 %v337, %v335
    %v418 = vpack.c.b16 %v340, %v338
    %v419 = vpack.c.b16 %v341, %v339
    %v420 = vpack.c.b16 %v344, %v342
    %v421 = vpack.c.b16 %v345, %v343
    %v422 = vpack.c.b16 %v348, %v346
    %v423 = vpack.c.b16 %v349, %v347
    %v424 = vpack.c.b16 %v352, %v350
    %v425 = vpack.c.b16 %v353, %v351
    %v426 = vpack.c.b16 %v356, %v354
    %v427 = vpack.c.b16 %v357, %v355
    %v428 = vpack.c.b16 %v360, %v358
    %v429 = vpack.c.b16 %v361, %v359
    %v430 = vpack.c.b16 %v364, %v362
    %v431 = vpack.c.b16 %v365, %v363
    %v432 = vpack.c.b16 %v368, %v366
    %v433 = vpack.c.b16 %v369, %v367
    %498 = vmatprep.subr.bf16.mxu0 %v371
    %499 = vmatpush1.bf16.msra.mxu0 %v370
    %500 = vmatprep.subr.bf16.mxu0 %v373
    %501 = vmatpush1.bf16.msra.mxu0 %v372
    %502 = vmatprep.subr.bf16.mxu0 %v375
    %503 = vmatpush1.bf16.msra.mxu0 %v374
    %504 = vmatprep.subr.bf16.mxu0 %v377
    %505 = vmatpush1.bf16.msra.mxu0 %v376
    %506 = vmatprep.subr.bf16.mxu0 %v379
    %507 = vmatpush1.bf16.msra.mxu0 %v378
    %508 = vmatprep.subr.bf16.mxu0 %v381
    %509 = vmatpush1.bf16.msra.mxu0 %v380
    %510 = vmatprep.subr.bf16.mxu0 %v383
    %511 = vmatpush1.bf16.msra.mxu0 %v382
    %512 = vmatprep.subr.bf16.mxu0 %v385
    %513 = vmatpush1.bf16.msra.mxu0 %v384
    %514 = vmatprep.subr.bf16.mxu0 %v387
    %515 = vmatpush1.bf16.msra.mxu0 %v386
    %516 = vmatprep.subr.bf16.mxu0 %v389
    %517 = vmatpush1.bf16.msra.mxu0 %v388
    %518 = vmatprep.subr.bf16.mxu0 %v391
    %519 = vmatpush1.bf16.msra.mxu0 %v390
    %520 = vmatprep.subr.bf16.mxu0 %v393
    %521 = vmatpush1.bf16.msra.mxu0 %v392
    %522 = vmatprep.subr.bf16.mxu0 %v395
    %523 = vmatpush1.bf16.msra.mxu0 %v394
    %524 = vmatprep.subr.bf16.mxu0 %v397
    %525 = vmatpush1.bf16.msra.mxu0 %v396
    %526 = vmatprep.subr.bf16.mxu0 %v399
    %527 = vmatpush1.bf16.msra.mxu0 %v398
    %528 = vmatprep.subr.bf16.mxu0 %v401
    %529 = vmatpush1.bf16.msra.mxu0 %v400
    %530 = vmatprep.mubr.bf16.mxu0 %v171
    %531 = vmatmul.mubr.bf16.gmra.mrb[0].mxu0 %v170
    %v532 = vpop.f32.mrb[0].mxu0
    %v533 = vadd.f32 %v151, %v532
    %v534 = vpop.f32.mrb[0].mxu0
    %v535 = vadd.f32 %v155, %v534
    %v536 = vpop.f32.mrb[0].mxu0
    %v537 = vadd.f32 %v151, %v536
    %v538 = vpop.f32.mrb[0].mxu0
    %v539 = vadd.f32 %v155, %v538
    %540 = vdwg.mxu0
    %541 = vmatprep.subr.bf16.mxu0 %v403
    %542 = vmatpush1.bf16.msra.mxu0 %v402
    %543 = vmatprep.subr.bf16.mxu0 %v405
    %544 = vmatpush1.bf16.msra.mxu0 %v404
    %545 = vmatprep.subr.bf16.mxu0 %v407
    %546 = vmatpush1.bf16.msra.mxu0 %v406
    %547 = vmatprep.subr.bf16.mxu0 %v409
    %548 = vmatpush1.bf16.msra.mxu0 %v408
    %549 = vmatprep.subr.bf16.mxu0 %v411
    %550 = vmatpush1.bf16.msra.mxu0 %v410
    %551 = vmatprep.subr.bf16.mxu0 %v413
    %552 = vmatpush1.bf16.msra.mxu0 %v412
    %553 = vmatprep.subr.bf16.mxu0 %v415
    %554 = vmatpush1.bf16.msra.mxu0 %v414
    %555 = vmatprep.subr.bf16.mxu0 %v417
    %556 = vmatpush1.bf16.msra.mxu0 %v416
    %557 = vmatprep.subr.bf16.mxu0 %v419
    %558 = vmatpush1.bf16.msra.mxu0 %v418
    %559 = vmatprep.subr.bf16.mxu0 %v421
    %560 = vmatpush1.bf16.msra.mxu0 %v420
    %561 = vmatprep.subr.bf16.mxu0 %v423
    %562 = vmatpush1.bf16.msra.mxu0 %v422
    %563 = vmatprep.subr.bf16.mxu0 %v425
    %564 = vmatpush1.bf16.msra.mxu0 %v424
    %565 = vmatprep.subr.bf16.mxu0 %v427
    %566 = vmatpush1.bf16.msra.mxu0 %v426
    %567 = vmatprep.subr.bf16.mxu0 %v429
    %568 = vmatpush1.bf16.msra.mxu0 %v428
    %569 = vmatprep.subr.bf16.mxu0 %v431
    %570 = vmatpush1.bf16.msra.mxu0 %v430
    %571 = vmatprep.subr.bf16.mxu0 %v433
    %572 = vmatpush1.bf16.msra.mxu0 %v432
    %573 = vmatprep.mubr.bf16.mxu0 %v173
    %574 = vmatmul.mubr.bf16.gmra.mrb[0].mxu0 %v172
    %v575 = vpop.f32.mrb[0].mxu0
    %v576 = vadd.f32 %v533, %v575
    %v577 = vpop.f32.mrb[0].mxu0
    %v578 = vadd.f32 %v535, %v577
    %v579 = vpop.f32.mrb[0].mxu0
    %v580 = vadd.f32 %v537, %v579
    %v581 = vpop.f32.mrb[0].mxu0
    %v582 = vadd.f32 %v539, %v581
    %583 = vdwg.mxu0
    %v584 = vld [vmem:[%s6] sm:$0x3]
    %v586 = vlaneseq
    %v587 = vshrl.u32 %v586, 7
    %v588 = vsub.s32 0, %v587
    %v589 = vrot.slane %v584, %v588
    %v590 = vlaneseq
    %v591 = vshrl.u32 %v590, 7
    %v592 = vsub.s32 1, %v591
    %v593 = vrot.slane %v584, %v592
    %v596 = vmul.f32 %v576, %v589
    %v597 = vmul.f32 %v578, %v593
    %v598 = vmul.f32 %v580, %v589
    %v599 = vmul.f32 %v582, %v593
    %v600 = vadd.f32 %v596, %v597
    %601 = vadd.xlane.f32.xlu0 %v600
    %v602 = vpop.xlane.xlu0 %601
    %v603 = vadd.f32 %v598, %v599
    %604 = vadd.xlane.f32.xlu0 %v603
    %v605 = vpop.xlane.xlu0 %604
    %v606 = vld [vmem:[#allocation3] sm:$0x1]
    %v608 = vlaneseq
    %v609 = vshrl.u32 %v608, 7
    %v610 = vsub.s32 0, %v609
    %v611 = vrot.slane %v606, %v610
    %v613 = vadd.f32 %v602, %v611
    %v614 = vadd.f32 %v605, %v611
    %v615 = vld [vmem:[#allocation2] sm:$0x1]
    %v617 = vlaneseq
    %v618 = vshrl.u32 %v617, 7
    %v619 = vsub.s32 0, %v618
    %v620 = vrot.slane %v615, %v619
    %v622 = vmax.f32 %v620, %v613
    %v623 = vmax.f32 %v620, %v614
    %v624 = vsub.f32 %v620, %v622
    %v625 = vsub.f32 %v620, %v623
    %v626 = vmul.f32 %v624, 1.442695
    %v627 = vpow.pop %v626
    %v628 = vmul.f32 %v625, 1.442695
    %v629 = vpow.pop %v628
    %v630 = vsub.f32 %v613, %v622
    %v631 = vsub.f32 %v614, %v623
    %v632 = vmul.f32 %v630, 1.442695
    %v633 = vpow.pop %v632
    %v634 = vmul.f32 %v631, 1.442695
    %v635 = vpow.pop %v634
    %v636 = vadd.f32 %v627, %v633
    %v637 = vadd.f32 %v629, %v635
    %v638 = vrcp.pop %v636
    %v639 = vrcp.pop %v637
    %v640 = vmul.f32 %v627, %v638
    %v641 = vmul.f32 %v629, %v639
    %v642 = vmul.f32 %v633, %v638
    %v643 = vmul.f32 %v635, %v639
    %v644 = vld [vmem:[%s0] sm:$0x3]
    %646 = vset.pattern.permute.xlu0 0
    %647 = vperm.xlu0 %646, %v640
    %v648 = vpop.permute.xlu0 %647
    %651 = vset.pattern.permute.xlu0 0
    %652 = vperm.xlu0 %651, %v641
    %v653 = vpop.permute.xlu0 %652
    %v656 = vlaneseq
    %v657 = vshrl.u32 %v656, 7
    %v658 = vsub.s32 0, %v657
    %v659 = vrot.slane %v644, %v658
    %v660 = vlaneseq
    %v661 = vshrl.u32 %v660, 7
    %v662 = vsub.s32 1, %v661
    %v663 = vrot.slane %v644, %v662
    %v666 = vmul.f32 %v648, %v659
    %v667 = vmul.f32 %v648, %v663
    %v668 = vmul.f32 %v653, %v659
    %v669 = vmul.f32 %v653, %v663
    %671 = vset.pattern.permute.xlu0 0
    %672 = vperm.xlu0 %671, %v642
    %v673 = vpop.permute.xlu0 %672
    %676 = vset.pattern.permute.xlu0 0
    %677 = vperm.xlu0 %676, %v643
    %v678 = vpop.permute.xlu0 %677
    %v680 = vmul.f32 %v673, %v576
    %v681 = vmul.f32 %v673, %v578
    %v682 = vmul.f32 %v678, %v580
    %v683 = vmul.f32 %v678, %v582
    %v684 = vadd.f32 %v666, %v680
    %v685 = vadd.f32 %v667, %v681
    %v686 = vadd.f32 %v668, %v682
    %v687 = vadd.f32 %v669, %v683
    %v688 = vpack.c.bf16 %v686, %v684
    %v689 = vpack.c.bf16 %v687, %v685
    %v690 = vld [vmem:[#allocation9] sm:$0xff]
    %v691 = vld [vmem:[#allocation9 + $0x8] sm:$0xff]
    %v692 = vld [vmem:[#allocation9 + $0x10] sm:$0xff]
    %v693 = vld [vmem:[#allocation9 + $0x18] sm:$0xff]
    %v694 = vld [vmem:[#allocation9 + $0x20] sm:$0xff]
    %v695 = vld [vmem:[#allocation9 + $0x28] sm:$0xff]
    %v696 = vld [vmem:[#allocation9 + $0x30] sm:$0xff]
    %v697 = vld [vmem:[#allocation9 + $0x38] sm:$0xff]
    %v698 = vld [vmem:[#allocation9 + $0x40] sm:$0xff]
    %v699 = vld [vmem:[#allocation9 + $0x48] sm:$0xff]
    %v700 = vld [vmem:[#allocation9 + $0x50] sm:$0xff]
    %v701 = vld [vmem:[#allocation9 + $0x58] sm:$0xff]
    %v702 = vld [vmem:[#allocation9 + $0x60] sm:$0xff]
    %v703 = vld [vmem:[#allocation9 + $0x68] sm:$0xff]
    %v704 = vld [vmem:[#allocation9 + $0x70] sm:$0xff]
    %v705 = vld [vmem:[#allocation9 + $0x78] sm:$0xff]
    %v706 = vld [vmem:[#allocation9 + $0x80] sm:$0xff]
    %v707 = vld [vmem:[#allocation9 + $0x88] sm:$0xff]
    %v708 = vld [vmem:[#allocation9 + $0x90] sm:$0xff]
    %v709 = vld [vmem:[#allocation9 + $0x98] sm:$0xff]
    %v710 = vld [vmem:[#allocation9 + $0xa0] sm:$0xff]
    %v711 = vld [vmem:[#allocation9 + $0xa8] sm:$0xff]
    %v712 = vld [vmem:[#allocation9 + $0xb0] sm:$0xff]
    %v713 = vld [vmem:[#allocation9 + $0xb8] sm:$0xff]
    %v714 = vld [vmem:[#allocation9 + $0xc0] sm:$0xff]
    %v715 = vld [vmem:[#allocation9 + $0xc8] sm:$0xff]
    %v716 = vld [vmem:[#allocation9 + $0xd0] sm:$0xff]
    %v717 = vld [vmem:[#allocation9 + $0xd8] sm:$0xff]
    %v718 = vld [vmem:[#allocation9 + $0xe0] sm:$0xff]
    %v719 = vld [vmem:[#allocation9 + $0xe8] sm:$0xff]
    %v720 = vld [vmem:[#allocation9 + $0xf0] sm:$0xff]
    %v721 = vld [vmem:[#allocation9 + $0xf8] sm:$0xff]
    %v722 = vld [vmem:[%s8] sm:$0x3]
    %v724 = vlaneseq
    %v725 = vshrl.u32 %v724, 7
    %v726 = vsub.s32 0, %v725
    %v727 = vrot.slane %v722, %v726
    %v728 = vlaneseq
    %v729 = vshrl.u32 %v728, 7
    %v730 = vsub.s32 1, %v729
    %v731 = vrot.slane %v722, %v730
    %v766 = vunpack.c.l.b16 %v690
    %v767 = vunpack.c.h.b16 %v690
    %v768 = vunpack.c.l.b16 %v691
    %v769 = vunpack.c.h.b16 %v691
    %v770 = vunpack.c.l.b16 %v692
    %v771 = vunpack.c.h.b16 %v692
    %v772 = vunpack.c.l.b16 %v693
    %v773 = vunpack.c.h.b16 %v693
    %v774 = vunpack.c.l.b16 %v694
    %v775 = vunpack.c.h.b16 %v694
    %v776 = vunpack.c.l.b16 %v695
    %v777 = vunpack.c.h.b16 %v695
    %v778 = vunpack.c.l.b16 %v696
    %v779 = vunpack.c.h.b16 %v696
    %v780 = vunpack.c.l.b16 %v697
    %v781 = vunpack.c.h.b16 %v697
    %v782 = vunpack.c.l.b16 %v698
    %v783 = vunpack.c.h.b16 %v698
    %v784 = vunpack.c.l.b16 %v699
    %v785 = vunpack.c.h.b16 %v699
    %v786 = vunpack.c.l.b16 %v700
    %v787 = vunpack.c.h.b16 %v700
    %v788 = vunpack.c.l.b16 %v701
    %v789 = vunpack.c.h.b16 %v701
    %v790 = vunpack.c.l.b16 %v702
    %v791 = vunpack.c.h.b16 %v702
    %v792 = vunpack.c.l.b16 %v703
    %v793 = vunpack.c.h.b16 %v703
    %v794 = vunpack.c.l.b16 %v704
    %v795 = vunpack.c.h.b16 %v704
    %v796 = vunpack.c.l.b16 %v705
    %v797 = vunpack.c.h.b16 %v705
    %v798 = vunpack.c.l.b16 %v706
    %v799 = vunpack.c.h.b16 %v706
    %v800 = vunpack.c.l.b16 %v707
    %v801 = vunpack.c.h.b16 %v707
    %v802 = vunpack.c.l.b16 %v708
    %v803 = vunpack.c.h.b16 %v708
    %v804 = vunpack.c.l.b16 %v709
    %v805 = vunpack.c.h.b16 %v709
    %v806 = vunpack.c.l.b16 %v710
    %v807 = vunpack.c.h.b16 %v710
    %v808 = vunpack.c.l.b16 %v711
    %v809 = vunpack.c.h.b16 %v711
    %v810 = vunpack.c.l.b16 %v712
    %v811 = vunpack.c.h.b16 %v712
    %v812 = vunpack.c.l.b16 %v713
    %v813 = vunpack.c.h.b16 %v713
    %v814 = vunpack.c.l.b16 %v714
    %v815 = vunpack.c.h.b16 %v714
    %v816 = vunpack.c.l.b16 %v715
    %v817 = vunpack.c.h.b16 %v715
    %v818 = vunpack.c.l.b16 %v716
    %v819 = vunpack.c.h.b16 %v716
    %v820 = vunpack.c.l.b16 %v717
    %v821 = vunpack.c.h.b16 %v717
    %v822 = vunpack.c.l.b16 %v718
    %v823 = vunpack.c.h.b16 %v718
    %v824 = vunpack.c.l.b16 %v719
    %v825 = vunpack.c.h.b16 %v719
    %v826 = vunpack.c.l.b16 %v720
    %v827 = vunpack.c.h.b16 %v720
    %v828 = vunpack.c.l.b16 %v721
    %v829 = vunpack.c.h.b16 %v721
    %v830 = vpack.c.b16 %v768, %v766
    %v831 = vpack.c.b16 %v769, %v767
    %v832 = vpack.c.b16 %v772, %v770
    %v833 = vpack.c.b16 %v773, %v771
    %v834 = vpack.c.b16 %v776, %v774
    %v835 = vpack.c.b16 %v777, %v775
    %v836 = vpack.c.b16 %v780, %v778
    %v837 = vpack.c.b16 %v781, %v779
    %v838 = vpack.c.b16 %v784, %v782
    %v839 = vpack.c.b16 %v785, %v783
    %v840 = vpack.c.b16 %v788, %v786
    %v841 = vpack.c.b16 %v789, %v787
    %v842 = vpack.c.b16 %v792, %v790
    %v843 = vpack.c.b16 %v793, %v791
    %v844 = vpack.c.b16 %v796, %v794
    %v845 = vpack.c.b16 %v797, %v795
    %v846 = vpack.c.b16 %v800, %v798
    %v847 = vpack.c.b16 %v801, %v799
    %v848 = vpack.c.b16 %v804, %v802
    %v849 = vpack.c.b16 %v805, %v803
    %v850 = vpack.c.b16 %v808, %v806
    %v851 = vpack.c.b16 %v809, %v807
    %v852 = vpack.c.b16 %v812, %v810
    %v853 = vpack.c.b16 %v813, %v811
    %v854 = vpack.c.b16 %v816, %v814
    %v855 = vpack.c.b16 %v817, %v815
    %v856 = vpack.c.b16 %v820, %v818
    %v857 = vpack.c.b16 %v821, %v819
    %v858 = vpack.c.b16 %v824, %v822
    %v859 = vpack.c.b16 %v825, %v823
    %v860 = vpack.c.b16 %v828, %v826
    %v861 = vpack.c.b16 %v829, %v827
    %894 = vmatprep.subr.bf16.mxu0 %v831
    %895 = vmatpush1.bf16.msra.mxu0 %v830
    %896 = vmatprep.subr.bf16.mxu0 %v833
    %897 = vmatpush1.bf16.msra.mxu0 %v832
    %898 = vmatprep.subr.bf16.mxu0 %v835
    %899 = vmatpush1.bf16.msra.mxu0 %v834
    %900 = vmatprep.subr.bf16.mxu0 %v837
    %901 = vmatpush1.bf16.msra.mxu0 %v836
    %902 = vmatprep.subr.bf16.mxu0 %v839
    %903 = vmatpush1.bf16.msra.mxu0 %v838
    %904 = vmatprep.subr.bf16.mxu0 %v841
    %905 = vmatpush1.bf16.msra.mxu0 %v840
    %906 = vmatprep.subr.bf16.mxu0 %v843
    %907 = vmatpush1.bf16.msra.mxu0 %v842
    %908 = vmatprep.subr.bf16.mxu0 %v845
    %909 = vmatpush1.bf16.msra.mxu0 %v844
    %910 = vmatprep.subr.bf16.mxu0 %v847
    %911 = vmatpush1.bf16.msra.mxu0 %v846
    %912 = vmatprep.subr.bf16.mxu0 %v849
    %913 = vmatpush1.bf16.msra.mxu0 %v848
    %914 = vmatprep.subr.bf16.mxu0 %v851
    %915 = vmatpush1.bf16.msra.mxu0 %v850
    %916 = vmatprep.subr.bf16.mxu0 %v853
    %917 = vmatpush1.bf16.msra.mxu0 %v852
    %918 = vmatprep.subr.bf16.mxu0 %v855
    %919 = vmatpush1.bf16.msra.mxu0 %v854
    %920 = vmatprep.subr.bf16.mxu0 %v857
    %921 = vmatpush1.bf16.msra.mxu0 %v856
    %922 = vmatprep.subr.bf16.mxu0 %v859
    %923 = vmatpush1.bf16.msra.mxu0 %v858
    %924 = vmatprep.subr.bf16.mxu0 %v861
    %925 = vmatpush1.bf16.msra.mxu0 %v860
    %926 = vmatprep.mubr.bf16.mxu0 %v689
    %927 = vmatmul.mubr.bf16.gmra.mrb[0].mxu0 %v688
    %v928 = vpop.f32.mrb[0].mxu0
    %v929 = vadd.f32 %v727, %v928
    %v930 = vpop.f32.mrb[0].mxu0
    %v931 = vadd.f32 %v731, %v930
    %v932 = vpop.f32.mrb[0].mxu0
    %v933 = vadd.f32 %v727, %v932
    %v934 = vpop.f32.mrb[0].mxu0
    %v935 = vadd.f32 %v731, %v934
    %936 = vdwg.mxu0
    %937 = vst [vmem:[#allocation10] sm:$0xff] %v929
    %938 = vst [vmem:[#allocation10 + $0x8] sm:$0xff] %v931
    %939 = vst [vmem:[#allocation10 + $0x10] sm:$0xff] %v933
    %940 = vst [vmem:[#allocation10 + $0x18] sm:$0xff] %v935
    // Predicated region
    $region50: #{tpu_custom_call.1} parent=1 // pred_check
      _
    $region51: #{tpu_custom_call.1} parent=1 // pred_check_branch
      %942 = sbr.rel (0) target = $region53
    $region52: #{tpu_custom_call.1} parent=1 // pred_region
      %s944 = ssub.s32 512, 512
      %945 = vsyncadd [#allocation6], %s944
      %s946 = sshll.u32 [#allocation10], 4
      %s947 = int_to_ptr.vmem [resolvable:$true] %s946
      %952 = dma.vmem_to_hbm [thread:$0]  %s947, 512, %s9, [#allocation6], 256, 256, 16
    $region53: #{tpu_custom_call.1} parent=1 // pred_fallthru
      _
    // Predicated region
    $region54: #{tpu_custom_call.1} parent=1 // pred_check
      _
    $region55: #{tpu_custom_call.1} parent=1 // pred_check_branch
      %954 = sbr.rel (0) target = $region57
    $region56: #{tpu_custom_call.1} parent=1 // pred_region
      %955 = dma.done [#allocation6], 512
    $region57: #{tpu_custom_call.1} parent=1 // pred_fallthru
      _
    %956 = vsyncpa [#allocation5], 1
    %957 = vsyncpa [#allocation8], 1
    %958 = vsyncpa [#allocation6], 1

</llo_original>
